<compile_context>
chip_gen: v5e
topology: v5e:2x2
jax: 0.10.0
libtpu: 0.0.40
codegen_flags: <defaults>
</compile_context>

<pallas_src>
import functools

import jax
import jax.numpy as jnp
from jax.experimental import pallas as pl
from jax.experimental.pallas import tpu as pltpu


_VMEM_LIMIT_BYTES = 48 * 1024 * 1024   # headroom under v7x's 64 MiB / TC
_NEG = -1.0e30                         # mask value for padded class lanes


def _round_up(x: int, m: int) -> int:
    return ((x + m - 1) // m) * m


def _workset_bytes() -> int:
    """Per-generation budget for one f32 (t_tile, u_tile, Cpad) logits tile."""
    try:
        kind = jax.devices()[0].device_kind.lower()
    except Exception:
        kind = ""
    if "v5" in kind or "v6" in kind:
        return 8 * 1024 * 1024          # 128 MiB VMEM / TC -> bigger tiles
    return 4 * 1024 * 1024              # v7x (64 MiB VMEM / TC) and unknown


# ---------------------------------------------------------------------------
# Stage 1: per-row projection   rows(x) @ W_half (+ bias)  -> (B, S, Cpad)
# ---------------------------------------------------------------------------
def _proj_kernel(x_ref, w_ref, o_ref):
    # x: (tS, D)   w: (D, Cpad)   o: (tS, Cpad)
    o_ref[...] = jnp.dot(x_ref[...], w_ref[...],
                         preferred_element_type=jnp.float32).astype(o_ref.dtype)


def _proj_bias_kernel(x_ref, w_ref, b_ref, o_ref):
    acc = jnp.dot(x_ref[...], w_ref[...], preferred_element_type=jnp.float32)
    o_ref[...] = (acc + b_ref[...]).astype(o_ref.dtype)


def _project(x, w, bias_row, tile_rows, out_dtype, interpret):
    b_, s_, d_ = x.shape
    c_pad = w.shape[1]
    grid = (b_, s_ // tile_rows)
    in_specs = [
        pl.BlockSpec((None, tile_rows, d_), lambda bb, ss: (bb, ss, 0)),
        pl.BlockSpec((d_, c_pad), lambda bb, ss: (0, 0)),      # W resident
    ]
    args = [x, w]
    kernel = _proj_kernel
    if bias_row is not None:                                    # decoder only
        in_specs.append(pl.BlockSpec((1, c_pad), lambda bb, ss: (0, 0)))
        args.append(bias_row)
        kernel = _proj_bias_kernel
    return pl.pallas_call(
        kernel,
        out_shape=jax.ShapeDtypeStruct((b_, s_, c_pad), out_dtype),
        grid_spec=pltpu.PrefetchScalarGridSpec(
            num_scalar_prefetch=0,
            grid=grid,
            in_specs=in_specs,
            out_specs=pl.BlockSpec((None, tile_rows, c_pad),
                                   lambda bb, ss: (bb, ss, 0)),
        ),
        compiler_params=pltpu.CompilerParams(
            dimension_semantics=("parallel", "parallel"),
            vmem_limit_bytes=_VMEM_LIMIT_BYTES),
        interpret=interpret,
    )(*args)


# ---------------------------------------------------------------------------
# Stage 2: broadcast add + log_softmax + exact-C store  (HBM-store-bound)
# ---------------------------------------------------------------------------
def _joint_kernel(ep_ref, dp_ref, o_ref, *, n_classes):
    ep = ep_ref[...].astype(jnp.float32)        # (tT, Cpad)
    dp = dp_ref[...].astype(jnp.float32)        # (tU, Cpad)  bias+pad mask folded
    # Upper-bound shift: max_c(ep) + max_c(dp) >= max_c(ep + dp).  Any shift
    # >= the true row max keeps log_softmax exact and this avoids a second
    # full-size (tT, tU, Cpad) reduce pass over the broadcast logits.
    m = (jnp.max(ep, axis=-1, keepdims=True)[:, None, :]
         + jnp.max(dp, axis=-1, keepdims=True)[None, :, :])       # (tT, tU, 1)
    shifted = ep[:, None, :] + dp[None, :, :] - m                 # (tT, tU, Cpad)
    lse = jnp.log(jnp.sum(jnp.exp(shifted), axis=-1, keepdims=True))
    # Exact-C store: padded class lanes are never written to HBM.
    o_ref[...] = (shifted[:, :, :n_classes] - lse).astype(o_ref.dtype)


def _choose_tiles(t_dim, u_dim, c_pad, workset_bytes):
    cap_t, cap_u = 128, 128
    # Keep u_tile (innermost; contiguous with the class dim in the row-major
    # output -> longest writeback DMAs) as large as possible: shrink T first.
    while cap_t * cap_u * c_pad * 4 > workset_bytes and cap_t > 16:
        cap_t //= 2
    while cap_t * cap_u * c_pad * 4 > workset_bytes and cap_u > 16:
        cap_u //= 2
    # Multiples of 16 so bf16 (packed-sublane) blocks stay legal everywhere.
    t_tile = min(cap_t, _round_up(t_dim, 16))
    u_tile = min(cap_u, _round_up(u_dim, 16))
    return t_tile, u_tile


def transducer_joint(encoder_outputs, decoder_outputs, fc_weight, fc_bias, *,
                     out_dtype=jnp.bfloat16, slice_output=True, interpret=False):
    """Pallas implementation of TransducerModel.joint().

    encoder_outputs: (B, T, D)        decoder_outputs: (B, U, D)
    fc_weight:       (num_classes, 2*D)  (PyTorch nn.Linear layout)
    fc_bias:         (num_classes,)
    out_dtype:       dtype of the (B, T, U, num_classes) log-probs.  Defaults
                     to bfloat16 (halves the HBM store traffic of the dominant
                     tensor); pass jnp.float32 for full f32 numerics.
    slice_output:    if T / U are not tile multiples an internal pad is sliced
                     off (one extra HBM pass); pass False to receive the
                     padded (B, Tp, Up, C) tensor and skip it.
    returns          (B, T, U, num_classes) log-probabilities.
    """
    b_, t_, d_ = encoder_outputs.shape
    b2, u_, d2 = decoder_outputs.shape
    c_, two_d = fc_weight.shape
    assert b_ == b2 and d_ == d2 and two_d == 2 * d_

    fast = jnp.dtype(out_dtype).itemsize <= 2
    proj_in_dtype = jnp.bfloat16 if fast else encoder_outputs.dtype
    proj_out_dtype = jnp.bfloat16 if fast else jnp.float32
    c_pad = _round_up(c_, 128)

    # Split concat-matmul:  [enc ; dec] @ W^T + b == enc @ We + (dec @ Wd + b)
    w = jnp.transpose(fc_weight).astype(proj_in_dtype)           # (2D, C)
    w_enc, w_dec = w[:d_], w[d_:]
    if c_pad != c_:
        pad = ((0, 0), (0, c_pad - c_))
        w_enc = jnp.pad(w_enc, pad)
        w_dec = jnp.pad(w_dec, pad)
    # Bias folded exactly once (into the decoder projection).  Padded class
    # lanes get a huge negative bias so they never win the max / add to the sum
    # (and they are never stored).
    bias_dec = jnp.concatenate(
        [fc_bias.astype(jnp.float32),
         jnp.full((c_pad - c_,), _NEG, jnp.float32)]).reshape(1, c_pad)

    t_tile, u_tile = _choose_tiles(t_, u_, c_pad, _workset_bytes())
    t_p, u_p = _round_up(t_, t_tile), _round_up(u_, u_tile)
    enc = encoder_outputs.astype(proj_in_dtype)
    dec = decoder_outputs.astype(proj_in_dtype)
    if t_p != t_:
        enc = jnp.pad(enc, ((0, 0), (0, t_p - t_), (0, 0)))
    if u_p != u_:
        dec = jnp.pad(dec, ((0, 0), (0, u_p - u_), (0, 0)))

    # ---- stage 1: hoisted projections (each row projected exactly once) ----
    enc_proj = _project(enc, w_enc, None, t_tile, proj_out_dtype, interpret)
    dec_proj = _project(dec, w_dec, bias_dec, u_tile, proj_out_dtype, interpret)

    # ---- stage 2: broadcast add + log_softmax, U innermost ----
    grid = (b_, t_p // t_tile, u_p // u_tile)
    out = pl.pallas_call(
        functools.partial(_joint_kernel, n_classes=c_),
        out_shape=jax.ShapeDtypeStruct((b_, t_p, u_p, c_), out_dtype),
        grid_spec=pltpu.PrefetchScalarGridSpec(
            num_scalar_prefetch=0,
            grid=grid,
            in_specs=[
                # enc_proj tile ignores the U index -> VMEM-resident across the
                # whole U sweep (no re-DMA).
                pl.BlockSpec((None, t_tile, c_pad), lambda bb, ii, jj: (bb, ii, 0)),
                pl.BlockSpec((None, u_tile, c_pad), lambda bb, ii, jj: (bb, jj, 0)),
            ],
            # Exact class count in the last dim (== full array dim).
            out_specs=pl.BlockSpec((None, t_tile, u_tile, c_),
                                   lambda bb, ii, jj: (bb, ii, jj, 0)),
        ),
        compiler_params=pltpu.CompilerParams(
            dimension_semantics=("parallel", "parallel", "arbitrary"),
            vmem_limit_bytes=_VMEM_LIMIT_BYTES),
        interpret=interpret,
    )(enc_proj, dec_proj)

    if slice_output and (t_p != t_ or u_p != u_):
        out = out[:, :t_, :u_]
    return out


if __name__ == "__main__":
    B, T, U, D, C = 2, 16, 16, 32, 37      # d_model=32, num_classes=37
    key = jax.random.PRNGKey(0)
    k1, k2, k3, k4 = jax.random.split(key, 4)
    enc = jax.random.normal(k1, (B, T, D), jnp.float32)
    dec = jax.random.normal(k2, (B, U, D), jnp.float32)
    fc_w = 0.05 * jax.random.normal(k3, (C, 2 * D), jnp.float32)  # torch Linear layout
    fc_b = 0.05 * jax.random.normal(k4, (C,), jnp.float32)

    # Default fast path (bf16 output) and exact f32 path.
    out_bf16 = jax.block_until_ready(transducer_joint(enc, dec, fc_w, fc_b))
    out_f32 = jax.block_until_ready(
        transducer_joint(enc, dec, fc_w, fc_b, out_dtype=jnp.float32))

    # Pure-JAX reference of TransducerModel.joint()
    enc_rep = jnp.broadcast_to(enc[:, :, None, :], (B, T, U, D))
    dec_rep = jnp.broadcast_to(dec[:, None, :, :], (B, T, U, D))
    cat = jnp.concatenate([enc_rep, dec_rep], axis=-1)
    ref = jax.nn.log_softmax(cat @ fc_w.T + fc_b, axis=-1)

    assert out_bf16.shape == (B, T, U, C) and out_bf16.dtype == jnp.bfloat16
    assert out_f32.shape == (B, T, U, C) and out_f32.dtype == jnp.float32
    err_f32 = float(jnp.max(jnp.abs(out_f32 - ref)))
    err_bf16 = float(jnp.max(jnp.abs(out_bf16.astype(jnp.float32) - ref)))
    if err_f32 < 1e-4 and err_bf16 < 5e-2:
        print("KERNEL_OK")
    else:
        print(f"KERNEL_MISMATCH err_f32={err_f32} err_bf16={err_bf16}")
</pallas_src>

<mosaic_0001>
module attributes {stable_mosaic.version = 11 : i64} {
  func.func @_proj_kernel(%arg0: i32, %arg1: i32, %arg2: memref<1x16x32xbf16, #tpu.memory_space<vmem>>, %arg3: memref<32x128xbf16, #tpu.memory_space<vmem>>, %arg4: memref<1x16x128xbf16, #tpu.memory_space<vmem>>) attributes {dimension_semantics = [#tpu.dimension_semantics<parallel>, #tpu.dimension_semantics<parallel>], iteration_bounds = array<i64: 2, 1>, scalar_prefetch = 0 : i64, scratch_operands = 0 : i64, tpu.core_type = #tpu.core_type<tc>, window_params = [{transform_indices = @transform_0, window_bounds = array<i64: 1, 16, 32>}, {pipeline_mode = #tpu.pipeline_mode<synchronous>, transform_indices = @transform_1, window_bounds = array<i64: 32, 128>}, {transform_indices = @transform_2, window_bounds = array<i64: 1, 16, 128>}]} {
    %c0 = arith.constant 0 : index
    %c0_0 = arith.constant 0 : index
    %c0_1 = arith.constant 0 : index
    %0 = vector.load %arg2[%c0, %c0_0, %c0_1] : memref<1x16x32xbf16, #tpu.memory_space<vmem>>, vector<1x16x32xbf16>
    %1 = vector.shape_cast %0 : vector<1x16x32xbf16> to vector<16x32xbf16>
    %c0_2 = arith.constant 0 : index
    %c0_3 = arith.constant 0 : index
    %2 = vector.load %arg3[%c0_2, %c0_3] : memref<32x128xbf16, #tpu.memory_space<vmem>>, vector<32x128xbf16>
    %cst = arith.constant dense<0.000000e+00> : vector<16x128xf32>
    %3 = tpu.matmul %1, %2, %cst {dimension_numbers = #tpu.dot_dimension_numbers<[1], [0], [0], [1], [0, 0, 1, 1], [], []>} : vector<16x32xbf16>, vector<32x128xbf16>, vector<16x128xf32> -> vector<16x128xf32>
    %4 = arith.truncf %3 : vector<16x128xf32> to vector<16x128xbf16>
    %c0_4 = arith.constant 0 : index
    %c0_5 = arith.constant 0 : index
    %c0_6 = arith.constant 0 : index
    %5 = vector.load %arg4[%c0_4, %c0_5, %c0_6] : memref<1x16x128xbf16, #tpu.memory_space<vmem>>, vector<1x16x128xbf16>
    %6 = vector.shape_cast %5 : vector<1x16x128xbf16> to vector<16x128xbf16>
    %7 = vector.shape_cast %4 : vector<16x128xbf16> to vector<1x16x128xbf16>
    tpu.vector_store %arg4[%c0_4, %c0_5, %c0_6], %7 {strides = array<i32>} : memref<1x16x128xbf16, #tpu.memory_space<vmem>>, vector<1x16x128xbf16>,
    return
  }
  func.func @transform_0(%arg0: i32, %arg1: i32) -> (i32, i32, i32) {
    %c0_i32 = arith.constant 0 : i32
    %c0_i32_0 = arith.constant 0 : i32
    return %arg0, %arg1, %c0_i32 : i32, i32, i32
  }
  func.func @transform_1(%arg0: i32, %arg1: i32) -> (i32, i32) {
    %c0_i32 = arith.constant 0 : i32
    %c0_i32_0 = arith.constant 0 : i32
    %c0_i32_1 = arith.constant 0 : i32
    return %c0_i32, %c0_i32_0 : i32, i32
  }
  func.func @transform_2(%arg0: i32, %arg1: i32) -> (i32, i32, i32) {
    %c0_i32 = arith.constant 0 : i32
    %c0_i32_0 = arith.constant 0 : i32
    return %arg0, %arg1, %c0_i32 : i32, i32, i32
  }
}

</mosaic_0001>

<llo_original>
// kernel: tpu_custom_call.1
$region0: #{tpu_custom_call.1}
  #allocation0 [shape = 'u32[]', space=smem, size = 0x4, offset = 0x4, fixed_abs, tag = 'smem constant byte address 0x4 - core index']
  #allocation1 [shape = 'u32[72,128]{1,0:T(1,128)}', space=vmem, size = 0x9000, scoped, tag = 'internal scratch']
  %s0 = inlined_call_operand.hbm [shape: bf16[2,16,32], index: 0, kind: input, shape index: {}]
  %s1 = inlined_call_operand.hbm [shape: bf16[32,128], index: 1, kind: input, shape index: {}]
  %s2 = inlined_call_operand.hbm [shape: bf16[2,16,128], index: 2, kind: output, shape index: {}]
  %s3 = sld [smem:[#allocation0]]
  $region49: #{tpu_custom_call.1} parent=0
    _
  %s5 = ssub.s32 1, %s3
  %s6 = scalar_select 0, %s5, %s3
  $region1: #{tpu_custom_call.1} parent=0
    #allocation2 [shape = 'u8[8192]{0}', space=vmem, size = 0x2000, scoped, tag = 'input window, operand 0']
    #allocation3 [shape = 's32[2]{0}', space=sflag, size = 0x8, scoped, tag = 'scoped memory for tpu_custom_call.1']
    #allocation4 [shape = 's32[2]{0}', space=sflag, size = 0x8, scoped, tag = 'scoped memory for tpu_custom_call.1']
    #allocation5 [shape = 'u8[8192]{0}', space=vmem, size = 0x2000, scoped, tag = 'input window, operand 1, single buffered']
    #allocation6 [shape = 's32[1]{0}', space=sflag, size = 0x4, scoped, tag = 'scoped memory for tpu_custom_call.1']
    #allocation7 [shape = 'u8[8192]{0}', space=vmem, size = 0x2000, scoped, tag = 'output window, operand 0']
    %7 = vsyncpa [#allocation3], 0
    %s8 = scalar_lea.sflag [#allocation3], 1
    %9 = vsyncpa %s8, 0
    %10 = vsyncpa [#allocation6], 0
    %11 = vsyncpa [#allocation4], 0
    %s12 = scalar_lea.sflag [#allocation4], 1
    %13 = vsyncpa %s12, 0
    loop: start=0, step=1, limit=4
    $region2: #{tpu_custom_call.1} parent=1 // loop_pre_header
      _
    $region3: #{tpu_custom_call.1} parent=1 // loop_header
      %s15 = sphi 0, %s19
      %p16 = scmp.ge.s32.totalorder %s15, 4
      %s22 = sphi 0, %s34
      %s23 = sphi 0, %s30
      %s24 = sphi 0, %s22
      %s25 = sphi 0, %s23
      %s26 = sphi 0, %s24
      %s27 = sphi 0, %s25
      %s39 = sphi 0, %s41
      %s42 = sphi 0, %s39
      %s43 = sphi 0, %s42
      %s59 = sphi 0, %s43
      %s63 = sphi 0, %s63
      %s65 = sphi 0, %s63
      %s66 = sphi 0, %s65
      %s80 = sphi 0, %s66
      %s88 = sphi 0, %s90
      %s91 = sphi 0, %s88
      %s92 = sphi 0, %s91
      %s108 = sphi 0, %s92
    $region4: #{tpu_custom_call.1} parent=1 // loop_header_branch
      %18 = sbr.rel (%p16) target = $region8
    $region5: #{tpu_custom_call.1} parent=1 // loop_body
      %s20 = ssub.s32 %s15, 1
      %s21 = ssub.s32 %s15, 2
      %s28 = sadd.s32 1, %s23
      %p29 = scmp.ge.s32.totalorder %s28, 1
      %s30 = scalar_select %p29, 0, %s28
      %s31 = sadd.s32 1, %s22
      %s32 = scalar_select %p29, %s31, %s22
      %p33 = scmp.ge.s32.totalorder %s32, 2
      %s34 = scalar_select %p33, 0, %s32
      %s35 = ssub.s32 %s22, %s34
      %s36 = ssub.s32 %s23, %s30
      %s37 = sor.u32 %s35, %s36
      %p38 = scmp.eq.s32.totalorder %s37, 0
      %s40 = sadd.s32 %s39, 1
      %s41 = scalar_select %p38, %s39, %s40
      %p44 = pneg %p38
      %p45 = scmp.eq.s32.totalorder %s15, 1
      %p46 = por %p44, %p45
      %p47 = scmp.ne.s32.totalorder %s39, %s42
      %p48 = scmp.eq.s32.totalorder %s15, 0
      %p49 = por %p47, %p48
      %p50 = scmp.ne.s32.totalorder %s39, %s42
      %p51 = scmp.eq.s32.totalorder %s20, 1
      %p52 = por %p50, %p51
      %p53 = scmp.ne.s32.totalorder %s42, %s43
      %p54 = scmp.eq.s32.totalorder %s20, 0
      %p55 = por %p53, %p54
      %p56 = scmp.ne.s32.totalorder %s42, %s43
      %p57 = scmp.eq.s32.totalorder %s21, 1
      %p58 = por %p56, %p57
      %p60 = scmp.ne.s32.totalorder %s43, %s59
      %p61 = scmp.eq.s32.totalorder %s21, 0
      %p62 = por %p60, %p61
      %s64 = sadd.s32 %s63, 1
      %p67 = scmp.eq.s32.totalorder %s15, 1
      %p68 = scmp.ne.s32.totalorder %s63, %s65
      %p69 = scmp.eq.s32.totalorder %s15, 0
      %p70 = por %p68, %p69
      %p71 = scmp.ne.s32.totalorder %s63, %s65
      %p72 = scmp.eq.s32.totalorder %s20, 1
      %p73 = por %p71, %p72
      %p74 = scmp.ne.s32.totalorder %s65, %s66
      %p75 = scmp.eq.s32.totalorder %s20, 0
      %p76 = por %p74, %p75
      %p77 = scmp.ne.s32.totalorder %s65, %s66
      %p78 = scmp.eq.s32.totalorder %s21, 1
      %p79 = por %p77, %p78
      %p81 = scmp.ne.s32.totalorder %s66, %s80
      %p82 = scmp.eq.s32.totalorder %s21, 0
      %p83 = por %p81, %p82
      %s84 = ssub.s32 %s22, %s34
      %s85 = ssub.s32 %s23, %s30
      %s86 = sor.u32 %s84, %s85
      %p87 = scmp.eq.s32.totalorder %s86, 0
      %s89 = sadd.s32 %s88, 1
      %s90 = scalar_select %p87, %s88, %s89
      %p93 = pneg %p87
      %p94 = scmp.eq.s32.totalorder %s15, 1
      %p95 = por %p93, %p94
      %p96 = scmp.ne.s32.totalorder %s88, %s91
      %p97 = scmp.eq.s32.totalorder %s15, 0
      %p98 = por %p96, %p97
      %p99 = scmp.ne.s32.totalorder %s88, %s91
      %p100 = scmp.eq.s32.totalorder %s20, 1
      %p101 = por %p99, %p100
      %p102 = scmp.ne.s32.totalorder %s91, %s92
      %p103 = scmp.eq.s32.totalorder %s20, 0
      %p104 = por %p102, %p103
      %p105 = scmp.ne.s32.totalorder %s91, %s92
      %p106 = scmp.eq.s32.totalorder %s21, 1
      %p107 = por %p105, %p106
      %p109 = scmp.ne.s32.totalorder %s92, %s108
      %p110 = scmp.eq.s32.totalorder %s21, 0
      %p111 = por %p109, %p110
      %p112 = scmp.le.s32.totalorder 1, %s15
      %p113 = scmp.lt.s32.totalorder %s15, 3
      %p114 = pnand %p112, %p113
      %p115 = pneg %p114
      // Predicated region
      $region9: #{tpu_custom_call.1} parent=5 // pred_check
        _
      $region10: #{tpu_custom_call.1} parent=5 // pred_check_branch
        %117 = sbr.rel (%p114) target = $region12
      $region11: #{tpu_custom_call.1} parent=5 // pred_region
        %s118 = ssub.s32 %s15, 1
        // Predicated region
        $region13: #{tpu_custom_call.1} parent=11 // pred_check
          %p119 = pneg %p76
        $region14: #{tpu_custom_call.1} parent=11 // pred_check_branch
          %121 = sbr.rel (%p119) target = $region16
        $region15: #{tpu_custom_call.1} parent=11 // pred_region
          %123 = vsyncadd [#allocation6], 0
          %s124 = sshll.u32 %s1, 4
          %s125 = int_to_ptr.hbm [resolvable:$true] %s124
          %s126 = sshll.u32 [#allocation5], 4
          %s127 = int_to_ptr.vmem [resolvable:$true] %s126
          %132 = dma.hbm_to_vmem [thread:$0]  %s125, 256, %s127, [#allocation6], 64, 64, 4
        $region16: #{tpu_custom_call.1} parent=11 // pred_fallthru
          _
      $region12: #{tpu_custom_call.1} parent=5 // pred_fallthru
        _
      %p133 = scmp.lt.s32.totalorder %s15, 2
      // Predicated region
      $region17: #{tpu_custom_call.1} parent=5 // pred_check
        %p134 = pneg %p133
      $region18: #{tpu_custom_call.1} parent=5 // pred_check_branch
        %136 = sbr.rel (%p134) target = $region20
      $region19: #{tpu_custom_call.1} parent=5 // pred_region
        // Predicated region
        $region21: #{tpu_custom_call.1} parent=19 // pred_check
          %p137 = pneg %p49
        $region22: #{tpu_custom_call.1} parent=19 // pred_check_branch
          %139 = sbr.rel (%p137) target = $region24
        $region23: #{tpu_custom_call.1} parent=19 // pred_region
          %s140 = sand.u32 %s39, 1
          %s141 = scalar_lea.sflag [#allocation3], %s140
          %s142 = sand.u32 %s39, 1
          %s143 = smul.addr %s142, 8
          %s144 = scalar_lea.vmem [#allocation2], %s143
          %s145 = smul.u32 2, %s23
          %147 = vsyncadd %s141, 0
          %s148 = smul.addr %s22, 2
          %s149 = sadd.s32 %s145, %s148
          %s150 = smul.addr %s149, 4
          %s151 = scalar_lea.hbm %s0, %s150
          %s152 = sshll.u32 %s151, 4
          %s153 = int_to_ptr.hbm [resolvable:$true] %s152
          %s154 = sshll.u32 %s144, 4
          %s155 = int_to_ptr.vmem [resolvable:$true] %s154
          %160 = dma.hbm_to_vmem [thread:$0]  %s153, 128, %s155, %s141, 64, 64, 4
        $region24: #{tpu_custom_call.1} parent=19 // pred_fallthru
          _
      $region20: #{tpu_custom_call.1} parent=5 // pred_fallthru
        _
      %p161 = scmp.le.s32.totalorder 1, %s15
      %p162 = scmp.lt.s32.totalorder %s15, 3
      %p163 = pnand %p161, %p162
      %p164 = pneg %p163
      // Predicated region
      $region25: #{tpu_custom_call.1} parent=5 // pred_check
        _
      $region26: #{tpu_custom_call.1} parent=5 // pred_check_branch
        %166 = sbr.rel (%p163) target = $region28
      $region27: #{tpu_custom_call.1} parent=5 // pred_region
        %s167 = ssub.s32 %s15, 1
        %s168 = sand.u32 %s42, 1
        %s169 = scalar_lea.sflag [#allocation3], %s168
        %s170 = sand.u32 %s42, 1
        %s171 = smul.addr %s170, 8
        %s172 = scalar_lea.vmem [#allocation2], %s171
        // Predicated region
        $region29: #{tpu_custom_call.1} parent=27 // pred_check
          %p173 = pneg %p55
        $region30: #{tpu_custom_call.1} parent=27 // pred_check_branch
          %175 = sbr.rel (%p173) target = $region32
        $region31: #{tpu_custom_call.1} parent=27 // pred_region
          %177 = dma.done %s169, 128
        $region32: #{tpu_custom_call.1} parent=27 // pred_fallthru
          _
        // Predicated region
        $region33: #{tpu_custom_call.1} parent=27 // pred_check
          %p178 = pneg %p76
        $region34: #{tpu_custom_call.1} parent=27 // pred_check_branch
          %180 = sbr.rel (%p178) target = $region36
        $region35: #{tpu_custom_call.1} parent=27 // pred_region
          %182 = dma.done [#allocation6], 256
        $region36: #{tpu_custom_call.1} parent=27 // pred_fallthru
          _
        %s183 = sand.u32 %s42, 1
        %s184 = scalar_lea.sflag [#allocation3], %s183
        %s185 = sand.u32 %s42, 1
        %s186 = smul.addr %s185, 8
        %s187 = scalar_lea.vmem [#allocation2], %s186
        %p188 = pneg %p55
        %p189 = pneg %p52
        %p190 = pneg %p76
        %p191 = pneg %p73
        %p192 = pneg %p104
        %p193 = pneg %p101
        %s194 = sand.u32 %s91, 1
        %s195 = scalar_lea.sflag [#allocation4], %s194
        %s196 = sand.u32 %s91, 1
        %s197 = smul.addr %s196, 8
        %s198 = scalar_lea.vmem [#allocation7], %s197
        %s199 = smul.u32 2, %s25
        %s200 = smul.u32 2, %s25
        %v202 = vld [vmem:[%s172] sm:$0xf]
        %v203 = vld [vmem:[%s172 + $0x4] sm:$0xf]
        %v204 = vld [vmem:[#allocation5] sm:$0xf]
        %v205 = vld [vmem:[#allocation5 + $0x4] sm:$0xf]
        %v206 = vld [vmem:[#allocation5 + $0x8] sm:$0xf]
        %v207 = vld [vmem:[#allocation5 + $0xc] sm:$0xf]
        %v210 = vunpack.c.l.b16 %v202
        %v211 = vunpack.c.l.b16 %v203
        %v212 = vpack.c.b16 %v211, %v210
        %v217 = vunpack.c.l.b16 %v204
        %v218 = vunpack.c.l.b16 %v205
        %v219 = vunpack.c.l.b16 %v206
        %v220 = vunpack.c.l.b16 %v207
        %v221 = vpack.c.b16 %v218, %v217
        %v222 = vpack.c.b16 %v220, %v219
        %vm225 = vcmask 261120
        %v227 = vsel %vm225, %v212, 0
        %229 = vmatpush.bf16.msra.mxu0 0
        %230 = vmatpush.bf16.msra.mxu0 0
        %231 = vmatpush.bf16.msra.mxu0 0
        %232 = vmatpush.bf16.msra.mxu0 0
        %233 = vmatpush.bf16.msra.mxu0 0
        %234 = vmatpush.bf16.msra.mxu0 0
        %235 = vmatpush.bf16.msra.mxu0 %v222
        %236 = vmatpush.bf16.msra.mxu0 %v221
        %237 = vmatmul.bf16.gmra.mxu0 %v227
        %v238 = vpop.f32.mrf.mxu0
        %v239 = vadd.f32 0.0, %v238
        %v240 = vpop.f32.mrf.mxu0
        %v241 = vadd.f32 0.0, %v240
        %242 = vdwg.mxu0
        %v243 = vpack.c.bf16 %v239, %v239
        %v244 = vpack.c.bf16 %v241, %v241
        %245 = vst [vmem:[%s198] sm:$0xf] %v243
        %246 = vst [vmem:[%s198 + $0x4] sm:$0xf] %v244
        %s247 = sand.u32 %s91, 1
        %s248 = scalar_lea.sflag [#allocation4], %s247
        %s249 = sand.u32 %s91, 1
        %s250 = smul.addr %s249, 8
        %s251 = scalar_lea.vmem [#allocation7], %s250
        // Predicated region
        $region37: #{tpu_custom_call.1} parent=27 // pred_check
          %p252 = pneg %p101
        $region38: #{tpu_custom_call.1} parent=27 // pred_check_branch
          %254 = sbr.rel (%p252) target = $region40
        $region39: #{tpu_custom_call.1} parent=27 // pred_region
          %s255 = smul.u32 2, %s25
          %257 = vsyncadd %s248, 0
          %s258 = smul.addr %s24, 2
          %s259 = sadd.s32 %s255, %s258
          %s260 = smul.addr %s259, 4
          %s261 = scalar_lea.hbm %s2, %s260
          %s262 = sshll.u32 %s251, 4
          %s263 = int_to_ptr.vmem [resolvable:$true] %s262
          %s264 = sshll.u32 %s261, 4
          %s265 = int_to_ptr.hbm [resolvable:$true] %s264
          %270 = dma.vmem_to_hbm [thread:$0]  %s263, 128, %s265, %s248, 64, 64, 4
        $region40: #{tpu_custom_call.1} parent=27 // pred_fallthru
          _
      $region28: #{tpu_custom_call.1} parent=5 // pred_fallthru
        _
      %p271 = scmp.le.s32.totalorder 2, %s15
      // Predicated region
      $region41: #{tpu_custom_call.1} parent=5 // pred_check
        %p272 = pneg %p271
      $region42: #{tpu_custom_call.1} parent=5 // pred_check_branch
        %274 = sbr.rel (%p272) target = $region44
      $region43: #{tpu_custom_call.1} parent=5 // pred_region
        %s275 = ssub.s32 %s15, 2
        // Predicated region
        $region45: #{tpu_custom_call.1} parent=43 // pred_check
          %p276 = pneg %p107
        $region46: #{tpu_custom_call.1} parent=43 // pred_check_branch
          %278 = sbr.rel (%p276) target = $region48
        $region47: #{tpu_custom_call.1} parent=43 // pred_region
          %s279 = sand.u32 %s92, 1
          %s280 = scalar_lea.sflag [#allocation4], %s279
          %s281 = sand.u32 %s92, 1
          %s282 = smul.addr %s281, 8
          %s283 = scalar_lea.vmem [#allocation7], %s282
          %285 = dma.done %s280, 128
        $region48: #{tpu_custom_call.1} parent=43 // pred_fallthru
          _
      $region44: #{tpu_custom_call.1} parent=5 // pred_fallthru
        _
    $region6: #{tpu_custom_call.1} parent=1 // loop_footer
      %s19 = sadd.s32 1, %s15
    $region7: #{tpu_custom_call.1} parent=1 // loop_footer_branch
      %14 = sbr.rel target = $region3
    $region8: #{tpu_custom_call.1} parent=1 // loop_exit
      _
    %286 = vsyncpa [#allocation3], 1
    %s287 = scalar_lea.sflag [#allocation3], 1
    %288 = vsyncpa %s287, 1
    %289 = vsyncpa [#allocation6], 1
    %290 = vsyncpa [#allocation4], 1
    %s291 = scalar_lea.sflag [#allocation4], 1
    %292 = vsyncpa %s291, 1

</llo_original>
